<compile_context>
chip_gen: v6e
topology: v6e:2x2x1
jax: 0.10.0
libtpu: 0.0.40
codegen_flags: <defaults>
</compile_context>

<pallas_src>
import functools

import jax
import jax.numpy as jnp
from jax import lax
from jax.experimental import pallas as pl
from jax.experimental.pallas import tpu as pltpu


# ---------------------------------------------------------------------------
# Kernels
# ---------------------------------------------------------------------------

def _simam_kernel(x_ref, o_ref, *, e_lambda, eps, approx_recip):
    """Single-pass: per-row (spatial) stats + elementwise apply in one block."""
    x = x_ref[...].astype(jnp.float32)
    mean = jnp.mean(x, axis=-1, keepdims=True)          # per-row spatial mean
    d = x - mean
    d2 = d * d
    var = jnp.mean(d2, axis=-1, keepdims=True)          # biased var (matches .mean())
    inv = 1.0 / (var + eps)                             # per-row (tile_rows, 1) divide
    energy = d2 * inv + e_lambda * x
    # sigmoid(-energy) = 1 / (1 + exp(energy)).  exp goes to the EUP slot; the
    # approximate reciprocal does too, so the stable-logistic lowering's
    # select / negate / VALU divide are avoided.  Clamp: exp overflow would
    # give attention == 0 anyway, clamp keeps it finite for any input.
    e = jnp.exp(jnp.minimum(energy, 80.0))
    if approx_recip:
        att = pl.reciprocal(1.0 + e, approx=True)
    else:
        att = 1.0 / (1.0 + e)
    o_ref[...] = (x * att).astype(o_ref.dtype)


def _simam_stats_kernel(x_ref, mean_ref, inv_ref, *, n, tile_n, eps):
    """Two-pass fallback, pass 1: accumulate per-row sum / sum(x^2) over column blocks."""
    j = pl.program_id(1)

    @pl.when(j == 0)
    def _():
        mean_ref[...] = jnp.zeros_like(mean_ref)
        inv_ref[...] = jnp.zeros_like(inv_ref)

    x = x_ref[...].astype(jnp.float32)
    # Mask columns past n: the reduced axis can have a partial edge block whose
    # padding is garbage and (unlike the row axis) is NOT masked away on store.
    col = j * tile_n + lax.broadcasted_iota(jnp.int32, x.shape, 1)
    x = jnp.where(col < n, x, 0.0)
    mean_ref[...] += jnp.sum(x, axis=-1, keepdims=True)      # running sum(x)
    inv_ref[...] += jnp.sum(x * x, axis=-1, keepdims=True)   # running sum(x^2)

    @pl.when(j == pl.num_programs(1) - 1)
    def _():
        mean = mean_ref[...] * (1.0 / n)
        # E[x^2] - mean^2; clamp against cancellation when |mean| >> std.
        var = jnp.maximum(inv_ref[...] * (1.0 / n) - mean * mean, 0.0)
        mean_ref[...] = mean
        inv_ref[...] = 1.0 / (var + eps)


def _simam_apply_kernel(x_ref, mean_ref, inv_ref, o_ref, *, e_lambda, approx_recip):
    """Two-pass fallback, pass 2: elementwise energy / sigmoid / multiply."""
    x = x_ref[...].astype(jnp.float32)
    d = x - mean_ref[...]
    energy = d * d * inv_ref[...] + e_lambda * x
    e = jnp.exp(jnp.minimum(energy, 80.0))
    if approx_recip:
        att = pl.reciprocal(1.0 + e, approx=True)
    else:
        att = 1.0 / (1.0 + e)
    o_ref[...] = (x * att).astype(o_ref.dtype)


# ---------------------------------------------------------------------------
# Wrapper
# ---------------------------------------------------------------------------

def _round_up(a, b):
    return pl.cdiv(a, b) * b


def _round_down(a, b):
    return (a // b) * b


def _tpu_info():
    """(vmem_capacity_bytes, is_v7x, is_v5e) with conservative fallbacks."""
    kind = ""
    try:
        kind = jax.devices()[0].device_kind.lower()
    except Exception:
        pass
    is_v7x = "7" in kind
    is_v5e = ("v5" in kind) and ("lite" in kind or "5e" in kind)
    vmem_cap = None
    try:
        vmem_cap = int(pltpu.get_tpu_info().vmem_capacity_bytes)
    except Exception:
        vmem_cap = None
    if not vmem_cap:
        # Conservative per-TC defaults: 64 MiB on v7x, 128 MiB on v5e/v6e.
        vmem_cap = (64 << 20) if is_v7x else (128 << 20)
    return vmem_cap, is_v7x, is_v5e


def simam(x, e_lambda=1e-4, eps=1e-5, *, approx_recip=True,
          target_block_bytes=None, force_two_pass=False, two_pass_tile_n=None):
    """SimAM forward. x: (B, C, H, W) array. Returns same shape/dtype."""
    B, C, H, W = x.shape
    n = H * W
    rows = B * C
    x2d = x.reshape(rows, n)                       # free view, no HBM copy
    itemsize = x.dtype.itemsize
    row_align = max(8, 32 // max(1, itemsize))     # sublane packing: f32 8, bf16 16, i8 32

    vmem_cap, is_v7x, is_v5e = _tpu_info()
    budget = vmem_cap // 2                         # working-set budget (rest: headroom)
    if target_block_bytes is None:
        # ~2 MiB on v5e (lowest HBM BW -> per-step overhead already small),
        # ~4 MiB on v6e/v7x (mem-bound sweet spot, amortizes ~0.35 us/step).
        target_block_bytes = (2 << 20) if is_v5e else (4 << 20)
    min_steps = 8 if is_v7x else 4                 # >= 2 steps per TensorCore on v7x

    # Single-pass footprint per block-row: double-buffered in + out blocks plus
    # ~4 f32-sized elementwise temporaries inside the kernel.
    per_row_foot = n * (4 * itemsize + 4 * 4)
    fits_single_pass = (not force_two_pass) and (row_align * per_row_foot <= budget)

    if fits_single_pass:
        # Rows per block from the byte target, clamped by the VMEM budget, the
        # grid-step floor (pipelining / megacore sharding) and the total rows.
        tile_rows = _round_down(max(row_align, target_block_bytes // (n * itemsize)),
                                row_align)
        tile_rows = min(tile_rows,
                        max(row_align, _round_down(budget // per_row_foot, row_align)))
        if rows >= min_steps * row_align:
            tile_rows = min(tile_rows,
                            max(row_align, _round_down(rows // min_steps, row_align)))
        tile_rows = min(tile_rows, _round_up(rows, row_align))
        tile_rows = max(row_align, tile_rows)

        vmem_est = tile_rows * per_row_foot
        vmem_limit = int(min(max(vmem_est + (4 << 20), 16 << 20), int(0.9 * vmem_cap)))

        kernel = functools.partial(_simam_kernel, e_lambda=e_lambda, eps=eps,
                                   approx_recip=approx_recip)
        out2d = pl.pallas_call(
            kernel,
            out_shape=jax.ShapeDtypeStruct((rows, n), x.dtype),
            grid_spec=pltpu.PrefetchScalarGridSpec(
                num_scalar_prefetch=0,
                grid=(pl.cdiv(rows, tile_rows),),   # partial edge block is masked;
                                                    # safe because the reduce is per-row
                in_specs=[pl.BlockSpec((tile_rows, n), lambda i: (i, 0))],
                out_specs=pl.BlockSpec((tile_rows, n), lambda i: (i, 0)),
            ),
            compiler_params=pltpu.CompilerParams(
                dimension_semantics=("parallel",),
                vmem_limit_bytes=vmem_limit,
            ),
        )(x2d)
        return out2d.reshape(B, C, H, W)

    # ------------------------------------------------------------------
    # Two-pass fallback for very large H*W (single-pass min block would not
    # fit the per-generation VMEM budget).  Pass 1 streams x and accumulates
    # per-row sum / sum(x^2) across column blocks; pass 2 streams x again and
    # applies the elementwise transform.  One extra HBM read of x, but every
    # block stays small and lane-dense.
    # ------------------------------------------------------------------
    tile_rows = row_align
    n_pad = _round_up(n, 128)
    if two_pass_tile_n is not None:
        tile_n = int(two_pass_tile_n)
    else:
        per_col_foot = tile_rows * (4 * itemsize + 4 * 4)
        tile_n = _round_down(max(128, target_block_bytes // (tile_rows * itemsize)), 128)
        tile_n = min(tile_n, max(128, _round_down(budget // per_col_foot, 128)))
    tile_n = max(128, _round_down(min(tile_n, n_pad), 128))
    if tile_n >= n:
        tile_n = n                                  # full-width block (always legal)

    grid = (pl.cdiv(rows, tile_rows), pl.cdiv(n, tile_n))
    block = tile_rows * tile_n
    vmem_est = max(2 * block * itemsize + 3 * block * 4,      # stats pass
                   4 * block * itemsize + 4 * block * 4)      # apply pass
    vmem_limit = int(min(max(vmem_est + (4 << 20), 16 << 20), int(0.9 * vmem_cap)))

    mean, inv = pl.pallas_call(
        functools.partial(_simam_stats_kernel, n=n, tile_n=tile_n, eps=eps),
        out_shape=(jax.ShapeDtypeStruct((rows, 1), jnp.float32),
                   jax.ShapeDtypeStruct((rows, 1), jnp.float32)),
        grid_spec=pltpu.PrefetchScalarGridSpec(
            num_scalar_prefetch=0,
            grid=grid,
            in_specs=[pl.BlockSpec((tile_rows, tile_n), lambda i, j: (i, j))],
            out_specs=[pl.BlockSpec((tile_rows, 1), lambda i, j: (i, 0)),
                       pl.BlockSpec((tile_rows, 1), lambda i, j: (i, 0))],
        ),
        compiler_params=pltpu.CompilerParams(
            dimension_semantics=("parallel", "arbitrary"),
            vmem_limit_bytes=vmem_limit,
        ),
    )(x2d)

    out2d = pl.pallas_call(
        functools.partial(_simam_apply_kernel, e_lambda=e_lambda,
                          approx_recip=approx_recip),
        out_shape=jax.ShapeDtypeStruct((rows, n), x.dtype),
        grid_spec=pltpu.PrefetchScalarGridSpec(
            num_scalar_prefetch=0,
            grid=grid,
            in_specs=[pl.BlockSpec((tile_rows, tile_n), lambda i, j: (i, j)),
                      pl.BlockSpec((tile_rows, 1), lambda i, j: (i, 0)),
                      pl.BlockSpec((tile_rows, 1), lambda i, j: (i, 0))],
            out_specs=pl.BlockSpec((tile_rows, tile_n), lambda i, j: (i, j)),
        ),
        compiler_params=pltpu.CompilerParams(
            dimension_semantics=("parallel", "parallel"),
            vmem_limit_bytes=vmem_limit,
        ),
    )(x2d, mean, inv)
    return out2d.reshape(B, C, H, W)


# ---------------------------------------------------------------------------
# Pure-JAX reference mirroring the PyTorch forward.
# ---------------------------------------------------------------------------

def _simam_ref(x, e_lambda=1e-4, eps=1e-5):
    mean = jnp.mean(x, axis=(2, 3), keepdims=True)
    var = jnp.mean((x - mean) ** 2, axis=(2, 3), keepdims=True)
    energy = (x - mean) ** 2 / (var + eps) + e_lambda * x
    return x * jax.nn.sigmoid(-energy)


if __name__ == "__main__":
    k0, k1 = jax.random.split(jax.random.PRNGKey(0))

    B, C, H, W = 2, 4, 16, 16
    x = jax.random.normal(k0, (B, C, H, W), dtype=jnp.float32)
    ref = _simam_ref(x)

    # Exact-reciprocal path: tight tolerance vs the reference.
    out_exact = jax.block_until_ready(simam(x, approx_recip=False))
    assert out_exact.shape == x.shape and out_exact.dtype == x.dtype
    assert jnp.allclose(out_exact, ref, atol=1e-5, rtol=1e-5), "exact path mismatch"

    # Default fast path (EUP exp + approx reciprocal): looser tolerance.
    out = jax.block_until_ready(simam(x))
    assert jnp.allclose(out, ref, atol=3e-3, rtol=3e-3), "approx path mismatch"

    # Force the large-H*W two-pass fallback on the small shape (tile_n=128 so
    # the column-accumulation / pl.when init+finalize path is exercised).
    out_2p = jax.block_until_ready(
        simam(x, approx_recip=False, force_two_pass=True, two_pass_tile_n=128))
    assert jnp.allclose(out_2p, ref, atol=1e-5, rtol=1e-5), "two-pass mismatch"

    # Non-128-aligned spatial map: masked lanes (single-pass) and a masked
    # partial column block in the two-pass stats kernel.
    x2 = jax.random.normal(k1, (2, 4, 12, 12), dtype=jnp.float32)
    ref2 = _simam_ref(x2)
    o2a = jax.block_until_ready(simam(x2, approx_recip=False))
    o2b = jax.block_until_ready(
        simam(x2, approx_recip=False, force_two_pass=True, two_pass_tile_n=128))
    assert jnp.allclose(o2a, ref2, atol=1e-5, rtol=1e-5), "masked single-pass mismatch"
    assert jnp.allclose(o2b, ref2, atol=1e-5, rtol=1e-5), "masked two-pass mismatch"

    print("KERNEL_OK")
</pallas_src>

<mosaic_0001>
module attributes {stable_mosaic.version = 11 : i64} {
  func.func @_simam_kernel(%arg0: i32, %arg1: memref<8x256xf32, #tpu.memory_space<vmem>>, %arg2: memref<8x256xf32, #tpu.memory_space<vmem>>) attributes {dimension_semantics = [#tpu.dimension_semantics<parallel>], iteration_bounds = array<i64: 1>, scalar_prefetch = 0 : i64, scratch_operands = 0 : i64, tpu.core_type = #tpu.core_type<tc>, window_params = [{transform_indices = @transform_0, window_bounds = array<i64: 8, 256>}, {transform_indices = @transform_1, window_bounds = array<i64: 8, 256>}]} {
    %c0 = arith.constant 0 : index
    %c0_0 = arith.constant 0 : index
    %0 = vector.load %arg1[%c0, %c0_0] : memref<8x256xf32, #tpu.memory_space<vmem>>, vector<8x256xf32>
    %cst = arith.constant dense<0.000000e+00> : vector<8xf32>
    %1 = vector.multi_reduction <add>, %0, %cst [1] : vector<8x256xf32> to vector<8xf32>
    %2 = vector.shape_cast %1 : vector<8xf32> to vector<8x1xf32>
    %cst_1 = arith.constant 2.560000e+02 : f32
    %3 = vector.broadcast %cst_1 : f32 to vector<8x1xf32>
    %4 = arith.divf %2, %3 : vector<8x1xf32>
    %5 = vector.broadcast %4 : vector<8x1xf32> to vector<8x256xf32>
    %6 = arith.subf %0, %5 : vector<8x256xf32>
    %7 = arith.mulf %6, %6 : vector<8x256xf32>
    %cst_2 = arith.constant dense<0.000000e+00> : vector<8xf32>
    %8 = vector.multi_reduction <add>, %7, %cst_2 [1] : vector<8x256xf32> to vector<8xf32>
    %9 = vector.shape_cast %8 : vector<8xf32> to vector<8x1xf32>
    %cst_3 = arith.constant 2.560000e+02 : f32
    %10 = vector.broadcast %cst_3 : f32 to vector<8x1xf32>
    %11 = arith.divf %9, %10 : vector<8x1xf32>
    %cst_4 = arith.constant 9.99999974E-6 : f32
    %12 = vector.broadcast %cst_4 : f32 to vector<8x1xf32>
    %13 = arith.addf %11, %12 : vector<8x1xf32>
    %cst_5 = arith.constant 1.000000e+00 : f32
    %14 = vector.broadcast %cst_5 : f32 to vector<8x1xf32>
    %15 = arith.divf %14, %13 : vector<8x1xf32>
    %16 = vector.broadcast %15 : vector<8x1xf32> to vector<8x256xf32>
    %17 = arith.mulf %7, %16 : vector<8x256xf32>
    %cst_6 = arith.constant 9.99999974E-5 : f32
    %18 = vector.broadcast %cst_6 : f32 to vector<8x256xf32>
    %19 = arith.mulf %18, %0 : vector<8x256xf32>
    %20 = arith.addf %17, %19 : vector<8x256xf32>
    %cst_7 = arith.constant 8.000000e+01 : f32
    %21 = vector.broadcast %cst_7 : f32 to vector<8x256xf32>
    %22 = arith.minimumf %20, %21 : vector<8x256xf32>
    %23 = math.exp %22 : vector<8x256xf32>
    %cst_8 = arith.constant 1.000000e+00 : f32
    %24 = vector.broadcast %cst_8 : f32 to vector<8x256xf32>
    %25 = arith.addf %24, %23 : vector<8x256xf32>
    %cst_9 = arith.constant 1.000000e+00 : f32
    %26 = vector.broadcast %cst_9 : f32 to vector<8x256xf32>
    %27 = arith.divf %26, %25 : vector<8x256xf32>
    %28 = arith.mulf %0, %27 : vector<8x256xf32>
    %c0_10 = arith.constant 0 : index
    %c0_11 = arith.constant 0 : index
    %29 = vector.load %arg2[%c0_10, %c0_11] : memref<8x256xf32, #tpu.memory_space<vmem>>, vector<8x256xf32>
    tpu.vector_store %arg2[%c0_10, %c0_11], %28 {strides = array<i32>} : memref<8x256xf32, #tpu.memory_space<vmem>>, vector<8x256xf32>,
    return
  }
  func.func @transform_0(%arg0: i32) -> (i32, i32) {
    %c0_i32 = arith.constant 0 : i32
    %c0_i32_0 = arith.constant 0 : i32
    return %arg0, %c0_i32 : i32, i32
  }
  func.func @transform_1(%arg0: i32) -> (i32, i32) {
    %c0_i32 = arith.constant 0 : i32
    %c0_i32_0 = arith.constant 0 : i32
    return %arg0, %c0_i32 : i32, i32
  }
}

</mosaic_0001>

<llo_original>
// kernel: tpu_custom_call.1
$region0: #{tpu_custom_call.1}
  #allocation0 [shape = 'u32[]', space=smem, size = 0x4, offset = 0x4, fixed_abs, tag = 'smem constant byte address 0x4 - core index']
  #allocation1 [shape = 'u32[144,128]{1,0:T(1,128)}', space=vmem, size = 0x12000, scoped, tag = 'internal scratch']
  %s0 = inlined_call_operand.hbm [shape: f32[8,256], index: 0, kind: input, shape index: {}]
  %s1 = inlined_call_operand.hbm [shape: f32[8,256], index: 1, kind: output, shape index: {}]
  %s2 = sld [smem:[#allocation0]]
  $region18: #{tpu_custom_call.1} parent=0
    _
  %s4 = ssub.s32 1, %s2
  %s5 = scalar_select 0, %s4, %s2
  $region1: #{tpu_custom_call.1} parent=0
    #allocation2 [shape = 'u8[8192]{0}', space=vmem, size = 0x2000, scoped, tag = 'input window, operand 0, single buffered']
    #allocation3 [shape = 's32[1]{0}', space=sflag, size = 0x4, scoped, tag = 'scoped memory for tpu_custom_call.1']
    #allocation4 [shape = 's32[1]{0}', space=sflag, size = 0x4, scoped, tag = 'scoped memory for tpu_custom_call.1']
    #allocation5 [shape = 'u8[8192]{0}', space=vmem, size = 0x2000, scoped, tag = 'output window, operand 0, single buffered']
    %6 = vsyncpa [#allocation3], 0
    %7 = vsyncpa [#allocation4], 0
    // Predicated region
    $region2: #{tpu_custom_call.1} parent=1 // pred_check
      _
    $region3: #{tpu_custom_call.1} parent=1 // pred_check_branch
      %9 = sbr.rel (0) target = $region5
    $region4: #{tpu_custom_call.1} parent=1 // pred_region
      %s11 = ssub.s32 256, 256
      %12 = vsyncadd [#allocation3], %s11
      %s14 = sshll.u32 [#allocation2], 4
      %s15 = int_to_ptr.vmem [resolvable:$true] %s14
      %17 = dma.hbm_to_vmem [thread:$0]  %s0, 256, %s15, [#allocation3]
    $region5: #{tpu_custom_call.1} parent=1 // pred_fallthru
      _
    // Predicated region
    $region6: #{tpu_custom_call.1} parent=1 // pred_check
      _
    $region7: #{tpu_custom_call.1} parent=1 // pred_check_branch
      %19 = sbr.rel (0) target = $region9
    $region8: #{tpu_custom_call.1} parent=1 // pred_region
      %20 = dma.done [#allocation3], 256
    $region9: #{tpu_custom_call.1} parent=1 // pred_fallthru
      _
    %v21 = vld [vmem:[#allocation2] sm:$0xff]
    %v22 = vld [vmem:[#allocation2 + $0x8] sm:$0xff]
    %v23 = vadd.f32 %v21, %v22
    %24 = vadd.xlane.f32.xlu0 %v23
    %v25 = vpop.xlane.xlu0 %24
    %v26 = vrcp.pop 256.0
    %v27 = vmul.f32 %v25, %v26
    %v28 = vsub.f32 %v21, %v27
    %v29 = vsub.f32 %v22, %v27
    %v30 = vmul.f32 %v28, %v28
    %v31 = vmul.f32 %v29, %v29
    %v32 = vadd.f32 %v30, %v31
    %33 = vadd.xlane.f32.xlu0 %v32
    %v34 = vpop.xlane.xlu0 %33
    %v35 = vmul.f32 %v34, %v26
    %v36 = vadd.f32 %v35, 1e-05
    %v37 = vrcp.pop %v36
    %v38 = vmul.f32 1.0, %v37
    %v39 = vmul.f32 %v30, %v38
    %v40 = vmul.f32 %v31, %v38
    %v41 = vmul.f32 %v21, 0.0001
    %v42 = vmul.f32 %v22, 0.0001
    %v43 = vadd.f32 %v39, %v41
    %v44 = vadd.f32 %v40, %v42
    %v45 = vmin.f32 %v43, 80.0
    %v46 = vmin.f32 %v44, 80.0
    %v47 = vmul.f32 %v45, 1.442695
    %v48 = vpow.pop %v47
    %v49 = vmul.f32 %v46, 1.442695
    %v50 = vpow.pop %v49
    %v51 = vadd.f32 %v48, 1.0
    %v52 = vadd.f32 %v50, 1.0
    %v53 = vrcp.pop %v51
    %v54 = vmul.f32 1.0, %v53
    %v55 = vrcp.pop %v52
    %v56 = vmul.f32 1.0, %v55
    %v57 = vmul.f32 %v21, %v54
    %v58 = vmul.f32 %v22, %v56
    %59 = vst [vmem:[#allocation5] sm:$0xff] %v57
    %60 = vst [vmem:[#allocation5 + $0x8] sm:$0xff] %v58
    // Predicated region
    $region10: #{tpu_custom_call.1} parent=1 // pred_check
      _
    $region11: #{tpu_custom_call.1} parent=1 // pred_check_branch
      %62 = sbr.rel (0) target = $region13
    $region12: #{tpu_custom_call.1} parent=1 // pred_region
      %s64 = ssub.s32 256, 256
      %65 = vsyncadd [#allocation4], %s64
      %s67 = sshll.u32 [#allocation5], 4
      %s68 = int_to_ptr.vmem [resolvable:$true] %s67
      %70 = dma.vmem_to_hbm [thread:$0]  %s68, 256, %s1, [#allocation4]
    $region13: #{tpu_custom_call.1} parent=1 // pred_fallthru
      _
    // Predicated region
    $region14: #{tpu_custom_call.1} parent=1 // pred_check
      _
    $region15: #{tpu_custom_call.1} parent=1 // pred_check_branch
      %72 = sbr.rel (0) target = $region17
    $region16: #{tpu_custom_call.1} parent=1 // pred_region
      %73 = dma.done [#allocation4], 256
    $region17: #{tpu_custom_call.1} parent=1 // pred_fallthru
      _
    %74 = vsyncpa [#allocation3], 1
    %75 = vsyncpa [#allocation4], 1

</llo_original>
